<compile_context>
chip_gen: v5e
topology: v5e:2x2
jax: 0.10.0
libtpu: 0.0.40
codegen_flags: <defaults>
</compile_context>

<pallas_src>
import functools

import jax
import jax.numpy as jnp
from jax import lax
from jax.experimental import pallas as pl
from jax.experimental.pallas import tpu as pltpu

EMBEDDING_DIM = 256

# Keep the table VMEM-resident when it fits comfortably under the scoped budget
# (leaves room for double-buffered output blocks on every TPU generation).
_VMEM_RESIDENT_TABLE_MAX_BYTES = 16 * 1024 * 1024
_DEFAULT_MAX_BLOCK_TOKENS = 512
_DEFAULT_NUM_INFLIGHT_DMAS = 8


def _round_up(x: int, m: int) -> int:
    return ((x + m - 1) // m) * m


def _embed_resident_kernel(idx_ref, w_ref, out_ref):
    """Gather TB rows from the VMEM-resident embedding table.

    idx_ref : SMEM (S_padded,) int32   scalar-prefetched token ids
    w_ref   : VMEM (V, D)              whole table, resident across grid steps
    out_ref : VMEM (TB, D)             output block for this grid step
    """
    tb = out_ref.shape[0]
    base = pl.program_id(0) * tb

    def body(t, carry):
        row = idx_ref[base + t]
        out_ref[pl.ds(t, 1), :] = w_ref[pl.ds(row, 1), :]
        return carry

    lax.fori_loop(0, tb, body, 0)


def _embed_hbm_gather_kernel(idx_ref, w_hbm_ref, out_ref, row_buf, sems, *, num_inflight):
    """Gather TB rows straight from the HBM table with `num_inflight` DMAs in flight.

    idx_ref   : SMEM (S_padded,) int32   scalar-prefetched token ids
    w_hbm_ref : ANY  (V, D)              embedding table left in HBM
    out_ref   : VMEM (TB, D)             output block
    row_buf   : VMEM (TB, D)             gather scratch
    sems      : DMA semaphores (num_inflight,)
    """
    tb = out_ref.shape[0]
    base = pl.program_id(0) * tb

    def issue(t):
        row = idx_ref[base + t]
        pltpu.make_async_copy(
            w_hbm_ref.at[row], row_buf.at[t], sems.at[t % num_inflight]
        ).start()

    # Prologue: fill the DMA pipe (num_inflight <= tb is enforced by the wrapper).
    for t in range(num_inflight):
        issue(t)

    def body(t, carry):
        # Wait for row t (shape-matched descriptor on the same semaphore slot),
        # then keep the pipe full by issuing row t + num_inflight.
        pltpu.make_async_copy(
            w_hbm_ref.at[0], row_buf.at[t], sems.at[t % num_inflight]
        ).wait()

        @pl.when(t + num_inflight < tb)
        def _():
            issue(t + num_inflight)

        return carry

    lax.fori_loop(0, tb, body, 0)

    # One dense (TB, D) store -> unmasked vst and a dense HBM writeback.
    out_ref[...] = row_buf[...]


def embed_forward(
    indices: jax.Array,
    weight: jax.Array,
    *,
    block_tokens: int | None = None,
    max_resident_table_bytes: int = _VMEM_RESIDENT_TABLE_MAX_BYTES,
    num_inflight: int = _DEFAULT_NUM_INFLIGHT_DMAS,
) -> jax.Array:
    """Pallas equivalent of nn.Embedding(V, D)(indices) for integer `indices`."""
    if weight.ndim != 2:
        raise ValueError(f"weight must be (vocab, dim), got {weight.shape}")
    vocab_size, emb_dim = weight.shape

    idx_shape = indices.shape
    flat_idx = jnp.asarray(indices, dtype=jnp.int32).reshape(-1)
    seq_len = int(flat_idx.shape[0])
    # PyTorch raises on out-of-range ids; we clamp so the gather stays in-bounds.
    flat_idx = jnp.clip(flat_idx, 0, vocab_size - 1)

    # Token-block size: multiple of 8 (f32 sublanes), capped for VMEM footprint.
    if block_tokens is None:
        block_tokens = min(_DEFAULT_MAX_BLOCK_TOKENS, _round_up(max(seq_len, 1), 8))
    tb = max(8, _round_up(int(block_tokens), 8))
    num_blocks = max(1, -(-seq_len // tb))
    padded_len = num_blocks * tb
    if padded_len != seq_len:
        flat_idx = jnp.pad(flat_idx, (0, padded_len - seq_len))

    itemsize = jnp.dtype(weight.dtype).itemsize
    table_bytes = vocab_size * emb_dim * itemsize
    block_bytes = tb * emb_dim * itemsize

    out_spec = pl.BlockSpec((tb, emb_dim), lambda i, idx_ref: (i, 0))
    out_shape = jax.ShapeDtypeStruct((padded_len, emb_dim), weight.dtype)

    if table_bytes <= max_resident_table_bytes:
        # Fast path: whole table VMEM-resident (constant block index -> DMA'd once).
        grid_spec = pltpu.PrefetchScalarGridSpec(
            num_scalar_prefetch=1,
            grid=(num_blocks,),
            in_specs=[pl.BlockSpec((vocab_size, emb_dim), lambda i, idx_ref: (0, 0))],
            out_specs=out_spec,
        )
        kernel = _embed_resident_kernel
        vmem_needed = table_bytes + 4 * block_bytes + (2 << 20)
    else:
        # Large table: leave it in HBM and stream rows with many DMAs in flight.
        k = max(1, min(int(num_inflight), tb))
        grid_spec = pltpu.PrefetchScalarGridSpec(
            num_scalar_prefetch=1,
            grid=(num_blocks,),
            in_specs=[pl.BlockSpec(memory_space=pl.ANY)],
            out_specs=out_spec,
            scratch_shapes=[
                pltpu.VMEM((tb, emb_dim), weight.dtype),
                pltpu.SemaphoreType.DMA((k,)),
            ],
        )
        kernel = functools.partial(_embed_hbm_gather_kernel, num_inflight=k)
        vmem_needed = 5 * block_bytes + (2 << 20)

    # Explicit VMEM budget; capped at 48 MiB so it is valid on v7x (64 MiB physical)
    # as well as v5e/v6e (128 MiB physical).
    vmem_limit = int(min(48 * 1024 * 1024, max(32 * 1024 * 1024, vmem_needed)))

    out = pl.pallas_call(
        kernel,
        out_shape=out_shape,
        grid_spec=grid_spec,
        compiler_params=pltpu.CompilerParams(
            # Each grid step writes a disjoint (TB, D) output block -> safe to mark
            # parallel; lets v7x shard the sequence across its two TensorCores.
            dimension_semantics=("parallel",),
            vmem_limit_bytes=vmem_limit,
        ),
    )(flat_idx, weight)

    if padded_len != seq_len:
        out = out[:seq_len]
    return out.reshape(*idx_shape, emb_dim)


class Embed:
    """Mirror of the PyTorch `Embed` module (nn.Embedding) with deterministic init."""

    def __init__(self, vocab_size: int, embedding_dim: int, key: jax.Array):
        # nn.Embedding default init: weight ~ N(0, 1)
        self.weight = jax.random.normal(
            key, (vocab_size, embedding_dim), dtype=jnp.float32
        )

    def __call__(self, indices: jax.Array, **kwargs) -> jax.Array:
        return embed_forward(indices, self.weight, **kwargs)


if __name__ == "__main__":
    key = jax.random.PRNGKey(0)
    k_w, k_idx, k_w2, k_idx2 = jax.random.split(key, 4)

    # --- Case 1: the gan-nmt.py setup — small vocab, one tokenized sentence. ---
    SRC_VOCAB_SIZE = 32   # stands in for len(src_vocab)
    SEQ_LEN = 18          # length of sentence1.split()

    src_embedding_layer = Embed(SRC_VOCAB_SIZE, EMBEDDING_DIM, k_w)
    sen1 = jax.random.randint(
        k_idx, (SEQ_LEN,), minval=0, maxval=SRC_VOCAB_SIZE, dtype=jnp.int32
    )

    src_embed = jax.block_until_ready(src_embedding_layer(sen1))
    ref1 = src_embedding_layer.weight[sen1]
    assert src_embed.shape == (SEQ_LEN, EMBEDDING_DIM)
    assert src_embed.dtype == jnp.float32
    assert bool(jnp.allclose(src_embed, ref1))

    # --- Case 2: multi-block resident-table path (padding + several grid steps). ---
    V2, S2 = 512, 200
    layer2 = Embed(V2, EMBEDDING_DIM, k_w2)
    idx2 = jax.random.randint(k_idx2, (S2,), minval=0, maxval=V2, dtype=jnp.int32)
    out2 = jax.block_until_ready(embed_forward(idx2, layer2.weight, block_tokens=64))
    assert out2.shape == (S2, EMBEDDING_DIM)
    assert bool(jnp.allclose(out2, layer2.weight[idx2]))

    # --- Case 3: force the HBM manual-DMA gather path (used for large vocabularies). ---
    out3 = jax.block_until_ready(
        embed_forward(
            idx2, layer2.weight, block_tokens=64, max_resident_table_bytes=0
        )
    )
    assert bool(jnp.allclose(out3, layer2.weight[idx2]))

    print("KERNEL_OK")
</pallas_src>

<mosaic_0001>
module attributes {stable_mosaic.version = 11 : i64} {
  func.func @_embed_resident_kernel(%arg0: i32, %arg1: memref<24xi32, #tpu.memory_space<smem>>, %arg2: memref<32x256xf32, #tpu.memory_space<vmem>>, %arg3: memref<24x256xf32, #tpu.memory_space<vmem>>) attributes {dimension_semantics = [#tpu.dimension_semantics<parallel>], iteration_bounds = array<i64: 1>, scalar_prefetch = 1 : i64, scratch_operands = 0 : i64, tpu.core_type = #tpu.core_type<tc>, window_params = [{pipeline_mode = #tpu.pipeline_mode<synchronous>, transform_indices = @transform_0, window_bounds = array<i64: 32, 256>}, {transform_indices = @transform_1, window_bounds = array<i64: 24, 256>}]} {
    %c24_i32 = arith.constant 24 : i32
    %0 = arith.muli %arg0, %c24_i32 : i32
    %c0_i32 = arith.constant 0 : i32
    %c24_i32_0 = arith.constant 24 : i32
    %1 = arith.addi %c0_i32, %c24_i32_0 : i32
    %c1_i32 = arith.constant 1 : i32
    scf.for %arg4 = %c0_i32 to %1 step %c1_i32  : i32 {
      %2 = arith.addi %0, %arg4 : i32
      %3 = arith.index_cast %2 : i32 to index
      %4 = memref.load %arg1[%3] : memref<24xi32, #tpu.memory_space<smem>>
      %5 = arith.index_cast %4 : i32 to index
      %c0 = arith.constant 0 : index
      %6 = vector.load %arg2[%5, %c0] : memref<32x256xf32, #tpu.memory_space<vmem>>, vector<1x256xf32>
      %7 = arith.index_cast %arg4 : i32 to index
      %c0_2 = arith.constant 0 : index
      %8 = vector.load %arg3[%7, %c0_2] : memref<24x256xf32, #tpu.memory_space<vmem>>, vector<1x256xf32>
      tpu.vector_store %arg3[%7, %c0_2], %6 {strides = array<i32>} : memref<24x256xf32, #tpu.memory_space<vmem>>, vector<1x256xf32>,
    }
    %c24_i32_1 = arith.constant 24 : i32
    return
  }
  func.func @transform_0(%arg0: i32, %arg1: memref<24xi32, #tpu.memory_space<smem>>) -> (i32, i32) {
    %c0_i32 = arith.constant 0 : i32
    %c0_i32_0 = arith.constant 0 : i32
    %c0_i32_1 = arith.constant 0 : i32
    return %c0_i32, %c0_i32_0 : i32, i32
  }
  func.func @transform_1(%arg0: i32, %arg1: memref<24xi32, #tpu.memory_space<smem>>) -> (i32, i32) {
    %c0_i32 = arith.constant 0 : i32
    %c0_i32_0 = arith.constant 0 : i32
    return %arg0, %c0_i32 : i32, i32
  }
}

</mosaic_0001>

<llo_original>
// kernel: tpu_custom_call.1
$region0: #{tpu_custom_call.1}
  #allocation0 [shape = 'u32[]', space=smem, size = 0x4, offset = 0x4, fixed_abs, tag = 'smem constant byte address 0x4 - core index']
  #allocation1 [shape = 'u32[72,128]{1,0:T(1,128)}', space=vmem, size = 0x9000, scoped, tag = 'internal scratch']
  #allocation2 [shape = 's32[1]{0}', space=sflag, size = 0x4, scoped, tag = 'scoped memory for tpu_custom_call.1']
  #allocation3 [shape = 'u8[512]{0}', space=smem, size = 0x200, scoped, tag = 'prefetched SMEM operand 0']
  %s0 = inlined_call_operand.hbm [shape: s32[24], index: 0, kind: input, shape index: {}]
  %s1 = inlined_call_operand.hbm [shape: f32[32,256], index: 1, kind: input, shape index: {}]
  %s2 = inlined_call_operand.hbm [shape: f32[24,256], index: 2, kind: output, shape index: {}]
  %s3 = sld [smem:[#allocation0]]
  $region25: #{tpu_custom_call.1} parent=0
    _
  %s5 = ssub.s32 1, %s3
  %s6 = scalar_select 0, %s5, %s3
  %s8 = sshll.u32 %s0, 4
  %s9 = int_to_ptr.hbm [resolvable:$true] %s8
  %11 = dma.hbm_to_smem %s9, 16, [#allocation3], [#allocation2]
  %13 = dma.done [#allocation2], 16
  %14 = sfence
  $region1: #{tpu_custom_call.1} parent=0
    #allocation4 [shape = 'u8[32768]{0}', space=vmem, size = 0x8000, scoped, tag = 'input window, operand 1, single buffered']
    #allocation5 [shape = 's32[1]{0}', space=sflag, size = 0x4, scoped, tag = 'scoped memory for tpu_custom_call.1']
    #allocation6 [shape = 's32[1]{0}', space=sflag, size = 0x4, scoped, tag = 'scoped memory for tpu_custom_call.1']
    #allocation7 [shape = 'u8[24576]{0}', space=vmem, size = 0x6000, scoped, tag = 'output window, operand 0, single buffered']
    %15 = vsyncpa [#allocation5], 0
    %16 = vsyncpa [#allocation6], 0
    // Predicated region
    $region2: #{tpu_custom_call.1} parent=1 // pred_check
      _
    $region3: #{tpu_custom_call.1} parent=1 // pred_check_branch
      %18 = sbr.rel (0) target = $region5
    $region4: #{tpu_custom_call.1} parent=1 // pred_region
      %20 = vsyncadd [#allocation5], 0
      %s21 = sshll.u32 %s1, 4
      %s22 = int_to_ptr.hbm [resolvable:$true] %s21
      %s23 = sshll.u32 [#allocation4], 4
      %s24 = int_to_ptr.vmem [resolvable:$true] %s23
      %29 = dma.hbm_to_vmem [thread:$0]  %s22, 1024, %s24, [#allocation5], 256, 256, 16
    $region5: #{tpu_custom_call.1} parent=1 // pred_fallthru
      _
    // Predicated region
    $region6: #{tpu_custom_call.1} parent=1 // pred_check
      _
    $region7: #{tpu_custom_call.1} parent=1 // pred_check_branch
      %31 = sbr.rel (0) target = $region9
    $region8: #{tpu_custom_call.1} parent=1 // pred_region
      %33 = dma.done [#allocation5], 1024
    $region9: #{tpu_custom_call.1} parent=1 // pred_fallthru
      _
    %s34 = smul.u32 0, 24
    loop: start=0, step=1, limit=24
    $region10: #{tpu_custom_call.1} parent=1 // loop_pre_header
      _
    $region11: #{tpu_custom_call.1} parent=1 // loop_header
      %s36 = sphi 0, %s40
      %p37 = scmp.ge.s32.totalorder %s36, 24
    $region12: #{tpu_custom_call.1} parent=1 // loop_header_branch
      %39 = sbr.rel (%p37) target = $region16
    $region13: #{tpu_custom_call.1} parent=1 // loop_body
      %s41 = sadd.s32 %s34, %s36
      %s42 = sld [smem:[#allocation3 + %s41]]
      %s43 = sshra.s32 %s42, 3
      %s44 = sand.u32 %s42, 7
      %s45 = sshra.s32 %s42, 3
      %s46 = sand.u32 %s42, 7
      %s47 = smul.u32 %s43, 2
      %s48 = smul.u32 %s47, 8
      %s49 = sadd.s32 %s48, %s46
      %s50 = scalar_lea.vmem [#allocation4], %s49
      %v51 = vld [vmem:[%s50] ss:$8 sm:$0x3]
      %v52 = vlaneseq
      %vm53 = vcmp.ge.s32.totalorder %v52, 0
      %vm54 = vcmp.lt.s32.totalorder %v52, 256
      %vm55 = vmand %vm53, %vm54
      %s56 = sshra.s32 %s36, 3
      %s57 = sand.u32 %s36, 7
      %s58 = sshra.s32 %s36, 3
      %s59 = sand.u32 %s36, 7
      %s60 = smul.u32 %s56, 2
      %s61 = smul.u32 %s60, 8
      %s62 = sadd.s32 %s61, %s59
      %s63 = scalar_lea.vmem [#allocation7], %s62
      %64 = vst.msk [vmem:[%s63] ss:$8 sm:$0x3] %vm55, %v51
      %65 = vst.msk [vmem:[%s63] ss:$8 sm:$0x0] %vm55, %v51
    $region14: #{tpu_custom_call.1} parent=1 // loop_footer
      %s40 = sadd.s32 1, %s36
    $region15: #{tpu_custom_call.1} parent=1 // loop_footer_branch
      %35 = sbr.rel target = $region11
    $region16: #{tpu_custom_call.1} parent=1 // loop_exit
      _
    // Predicated region
    $region17: #{tpu_custom_call.1} parent=1 // pred_check
      _
    $region18: #{tpu_custom_call.1} parent=1 // pred_check_branch
      %67 = sbr.rel (0) target = $region20
    $region19: #{tpu_custom_call.1} parent=1 // pred_region
      %69 = vsyncadd [#allocation6], 0
      %s70 = sshll.u32 [#allocation7], 4
      %s71 = int_to_ptr.vmem [resolvable:$true] %s70
      %s72 = sshll.u32 %s2, 4
      %s73 = int_to_ptr.hbm [resolvable:$true] %s72
      %78 = dma.vmem_to_hbm [thread:$0]  %s71, 768, %s73, [#allocation6], 256, 256, 16
    $region20: #{tpu_custom_call.1} parent=1 // pred_fallthru
      _
    // Predicated region
    $region21: #{tpu_custom_call.1} parent=1 // pred_check
      _
    $region22: #{tpu_custom_call.1} parent=1 // pred_check_branch
      %80 = sbr.rel (0) target = $region24
    $region23: #{tpu_custom_call.1} parent=1 // pred_region
      %82 = dma.done [#allocation6], 768
    $region24: #{tpu_custom_call.1} parent=1 // pred_fallthru
      _
    %83 = vsyncpa [#allocation5], 1
    %84 = vsyncpa [#allocation6], 1

</llo_original>
